<compile_context>
chip_gen: v5e
topology: v5e:2x2
jax: 0.10.0
libtpu: 0.0.40
codegen_flags: <defaults>
</compile_context>

<pallas_src>
import functools

import jax
import jax.numpy as jnp
from jax.experimental import pallas as pl
from jax.experimental.pallas import tpu as pltpu

num_gaussians = 20

_LANE = 128                 # TPU lane width: each head gets one lane-aligned slab
_NHEADS = 3                 # pi | sigma | mu
_NFUSED = _NHEADS * _LANE   # 384 fused output columns


def _mdn_fused_kernel(x_ref, w_ref, b_ref, out_ref, *, n_gauss):
    """One fused MXU matmul + lane-dense epilogue for all three MDN heads."""
    x = x_ref[...]                                         # (TB, D) f32

    # Single MXU push: (TB, D) @ (D, 384) -> (TB, 384); fused bias is a
    # lane-aligned (1, 384) vreg add.
    y = jnp.dot(x, w_ref[...], preferred_element_type=jnp.float32) + b_ref[...]

    # ---- pi head: softmax over slab [0:128), masking the padded lanes ----
    logits = y[:, 0:_LANE]                                 # lane-aligned slice
    col = jax.lax.broadcasted_iota(jnp.int32, logits.shape, 1)
    logits = jnp.where(col < n_gauss, logits, jnp.float32(-1e30))
    m = jnp.max(logits, axis=1, keepdims=True)
    e = jnp.exp(logits - m)                                # padded lanes -> 0
    denom = jnp.sum(e, axis=1, keepdims=True)
    r = pl.reciprocal(denom, approx=True)                  # EUP vrcp (free slot)
    r = r * (2.0 - denom * r)                              # one Newton step -> f32 accuracy
    out_ref[:, 0:_LANE] = e * r

    # ---- sigma head: exp(linear), slab [128:256) ----
    out_ref[:, _LANE:2 * _LANE] = jnp.exp(y[:, _LANE:2 * _LANE])

    # ---- mu head: linear, slab [256:384) ----
    out_ref[:, 2 * _LANE:3 * _LANE] = y[:, 2 * _LANE:3 * _LANE]


def _pack_fused_params(params):
    """Pack the three heads into one lane-padded (D, 384) weight and a (1, 384)
    bias: [pi | sigma | mu], each head padded out to a full 128-lane slab."""
    w_pi, w_sig, w_mu = params["w_pi"], params["w_sigma"], params["w_mu"]
    D, G = w_pi.shape
    GO = w_sig.shape[1]
    assert G <= _LANE and GO <= _LANE, "each head must fit in one 128-lane slab"

    w = jnp.zeros((D, _NFUSED), jnp.float32)
    w = w.at[:, 0:G].set(w_pi.astype(jnp.float32))
    w = w.at[:, _LANE:_LANE + GO].set(w_sig.astype(jnp.float32))
    w = w.at[:, 2 * _LANE:2 * _LANE + GO].set(w_mu.astype(jnp.float32))

    b = jnp.zeros((1, _NFUSED), jnp.float32)
    b = b.at[0, 0:G].set(params["b_pi"].astype(jnp.float32))
    b = b.at[0, _LANE:_LANE + GO].set(params["b_sigma"].astype(jnp.float32))
    b = b.at[0, 2 * _LANE:2 * _LANE + GO].set(params["b_mu"].astype(jnp.float32))
    return w, b


def mdn_forward(x, params):
    """x: (B, in_features) f32. Returns (pi (B,G), sigma (B,G,O), mu (B,G,O))."""
    B, D = x.shape
    G = params["w_pi"].shape[1]
    GO = params["w_sigma"].shape[1]
    O = GO // G

    w_fused, b_fused = _pack_fused_params(params)

    # Batch tiling: sublane-aligned tile; "parallel" grid axis shards across
    # TensorCores (megacore / v7x) when B is large. At B=8 this is grid=(1,).
    if B >= 256:
        TB = 256
    else:
        TB = ((B + 7) // 8) * 8
    B_pad = ((B + TB - 1) // TB) * TB
    x_p = x.astype(jnp.float32)
    if B_pad != B:
        x_p = jnp.pad(x_p, ((0, B_pad - B), (0, 0)))
    grid = (B_pad // TB,)

    cost = pl.CostEstimate(
        flops=2 * B_pad * D * _NFUSED + 8 * B_pad * _NFUSED,
        transcendentals=2 * B_pad * _LANE,
        bytes_accessed=4 * (B_pad * D + D * _NFUSED + _NFUSED + B_pad * _NFUSED),
    )

    out = pl.pallas_call(
        functools.partial(_mdn_fused_kernel, n_gauss=G),
        out_shape=jax.ShapeDtypeStruct((B_pad, _NFUSED), jnp.float32),
        grid=grid,
        in_specs=[
            pl.BlockSpec((TB, D), lambda i: (i, 0)),        # x batch tile
            pl.BlockSpec((D, _NFUSED), lambda i: (0, 0)),   # fused W, VMEM-resident
            pl.BlockSpec((1, _NFUSED), lambda i: (0, 0)),   # fused bias row
        ],
        out_specs=pl.BlockSpec((TB, _NFUSED), lambda i: (i, 0)),
        compiler_params=pltpu.CompilerParams(
            dimension_semantics=("parallel",)),
        cost_estimate=cost,
    )(x_p, w_fused, b_fused)

    # Trim lane padding + pure-glue reshape in JAX.
    pi = out[:B, 0:G]
    sigma = out[:B, _LANE:_LANE + GO].reshape(B, G, O)
    mu = out[:B, 2 * _LANE:2 * _LANE + GO].reshape(B, G, O)
    return pi, sigma, mu


def init_mdn_params(key, in_features, out_features, G):
    """Deterministic init mimicking nn.Linear (uniform +/- 1/sqrt(fan_in))."""
    ks = jax.random.split(key, 6)
    bound = 1.0 / (in_features ** 0.5)
    GO = G * out_features
    u = lambda k, shape: jax.random.uniform(
        k, shape, dtype=jnp.float32, minval=-bound, maxval=bound)
    return {
        "w_pi": u(ks[0], (in_features, G)),
        "b_pi": u(ks[1], (G,)),
        "w_sigma": u(ks[2], (in_features, GO)),
        "b_sigma": u(ks[3], (GO,)),
        "w_mu": u(ks[4], (in_features, GO)),
        "b_mu": u(ks[5], (GO,)),
    }


if __name__ == "__main__":
    key = jax.random.PRNGKey(0)
    k_x, k_p = jax.random.split(key)

    B = 8
    in_features = 32
    out_features = 4
    G = num_gaussians  # 20

    x = jax.random.normal(k_x, (B, in_features), dtype=jnp.float32)
    params = init_mdn_params(k_p, in_features, out_features, G)

    pi, sigma, mu = mdn_forward(x, params)
    jax.block_until_ready((pi, sigma, mu))

    # Plain-JAX reference check.
    ref_logits = x @ params["w_pi"] + params["b_pi"]
    ref_pi = jax.nn.softmax(ref_logits, axis=1)
    ref_sigma = jnp.exp(x @ params["w_sigma"] + params["b_sigma"]).reshape(
        B, G, out_features)
    ref_mu = (x @ params["w_mu"] + params["b_mu"]).reshape(B, G, out_features)

    assert pi.shape == (B, G)
    assert sigma.shape == (B, G, out_features)
    assert mu.shape == (B, G, out_features)
    assert jnp.allclose(pi, ref_pi, atol=2e-5)
    assert jnp.allclose(sigma, ref_sigma, atol=1e-4, rtol=1e-5)
    assert jnp.allclose(mu, ref_mu, atol=1e-5)
    assert jnp.allclose(jnp.sum(pi, axis=1), 1.0, atol=1e-5)

    print("KERNEL_OK")
</pallas_src>

<mosaic_0001>
module attributes {stable_mosaic.version = 11 : i64} {
  func.func @_mdn_fused_kernel(%arg0: i32, %arg1: memref<8x32xf32, #tpu.memory_space<vmem>>, %arg2: memref<32x384xf32, #tpu.memory_space<vmem>>, %arg3: memref<1x384xf32, #tpu.memory_space<vmem>>, %arg4: memref<8x384xf32, #tpu.memory_space<vmem>>) attributes {dimension_semantics = [#tpu.dimension_semantics<parallel>], iteration_bounds = array<i64: 1>, scalar_prefetch = 0 : i64, scratch_operands = 0 : i64, tpu.core_type = #tpu.core_type<tc>, window_params = [{transform_indices = @transform_0, window_bounds = array<i64: 8, 32>}, {pipeline_mode = #tpu.pipeline_mode<synchronous>, transform_indices = @transform_1, window_bounds = array<i64: 32, 384>}, {pipeline_mode = #tpu.pipeline_mode<synchronous>, transform_indices = @transform_2, window_bounds = array<i64: 1, 384>}, {transform_indices = @transform_3, window_bounds = array<i64: 8, 384>}]} {
    %c0 = arith.constant 0 : index
    %c0_0 = arith.constant 0 : index
    %0 = vector.load %arg1[%c0, %c0_0] : memref<8x32xf32, #tpu.memory_space<vmem>>, vector<8x32xf32>
    %c0_1 = arith.constant 0 : index
    %c0_2 = arith.constant 0 : index
    %1 = vector.load %arg2[%c0_1, %c0_2] : memref<32x384xf32, #tpu.memory_space<vmem>>, vector<32x384xf32>
    %cst = arith.constant dense<0.000000e+00> : vector<8x384xf32>
    %2 = tpu.matmul %0, %1, %cst {dimension_numbers = #tpu.dot_dimension_numbers<[1], [0], [0], [1], [0, 0, 1, 1], [], []>} : vector<8x32xf32>, vector<32x384xf32>, vector<8x384xf32> -> vector<8x384xf32>
    %c0_3 = arith.constant 0 : index
    %c0_4 = arith.constant 0 : index
    %3 = vector.load %arg3[%c0_3, %c0_4] : memref<1x384xf32, #tpu.memory_space<vmem>>, vector<1x384xf32>
    %4 = vector.broadcast %3 : vector<1x384xf32> to vector<8x384xf32>
    %5 = arith.addf %2, %4 : vector<8x384xf32>
    %6 = vector.extract_strided_slice %5 {offsets = [0, 0], sizes = [8, 128], strides = [1, 1]} : vector<8x384xf32> to vector<8x128xf32>
    %7 = tpu.iota {dimensions = array<i32: 1>} : vector<8x128xi32>
    %c20_i32 = arith.constant 20 : i32
    %8 = vector.broadcast %c20_i32 : i32 to vector<8x128xi32>
    %9 = arith.cmpi slt, %7, %8 : vector<8x128xi32>
    %cst_5 = arith.constant -1.000000e+30 : f32
    %10 = vector.broadcast %cst_5 : f32 to vector<8x128xf32>
    %11 = arith.select %9, %6, %10 : vector<8x128xi1>, vector<8x128xf32>
    %cst_6 = arith.constant dense<0xFF800000> : vector<8xf32>
    %12 = vector.multi_reduction <maximumf>, %11, %cst_6 [1] : vector<8x128xf32> to vector<8xf32>
    %13 = vector.shape_cast %12 : vector<8xf32> to vector<8x1xf32>
    %14 = vector.broadcast %13 : vector<8x1xf32> to vector<8x128xf32>
    %15 = arith.subf %11, %14 : vector<8x128xf32>
    %16 = math.exp %15 : vector<8x128xf32>
    %cst_7 = arith.constant dense<0.000000e+00> : vector<8xf32>
    %17 = vector.multi_reduction <add>, %16, %cst_7 [1] : vector<8x128xf32> to vector<8xf32>
    %18 = vector.shape_cast %17 : vector<8xf32> to vector<8x1xf32>
    %19 = tpu.reciprocal %18 {approx = true} : vector<8x1xf32> -> vector<8x1xf32>
    %20 = arith.mulf %18, %19 : vector<8x1xf32>
    %cst_8 = arith.constant 2.000000e+00 : f32
    %21 = vector.broadcast %cst_8 : f32 to vector<8x1xf32>
    %22 = arith.subf %21, %20 : vector<8x1xf32>
    %23 = arith.mulf %19, %22 : vector<8x1xf32>
    %24 = vector.broadcast %23 : vector<8x1xf32> to vector<8x128xf32>
    %25 = arith.mulf %16, %24 : vector<8x128xf32>
    %c0_9 = arith.constant 0 : index
    %c0_10 = arith.constant 0 : index
    %26 = vector.load %arg4[%c0_9, %c0_10] : memref<8x384xf32, #tpu.memory_space<vmem>>, vector<8x128xf32>
    tpu.vector_store %arg4[%c0_9, %c0_10], %25 {strides = array<i32>} : memref<8x384xf32, #tpu.memory_space<vmem>>, vector<8x128xf32>,
    %27 = vector.extract_strided_slice %5 {offsets = [0, 128], sizes = [8, 128], strides = [1, 1]} : vector<8x384xf32> to vector<8x128xf32>
    %28 = math.exp %27 : vector<8x128xf32>
    %c0_11 = arith.constant 0 : index
    %c128 = arith.constant 128 : index
    %29 = vector.load %arg4[%c0_11, %c128] : memref<8x384xf32, #tpu.memory_space<vmem>>, vector<8x128xf32>
    tpu.vector_store %arg4[%c0_11, %c128], %28 {strides = array<i32>} : memref<8x384xf32, #tpu.memory_space<vmem>>, vector<8x128xf32>,
    %30 = vector.extract_strided_slice %5 {offsets = [0, 256], sizes = [8, 128], strides = [1, 1]} : vector<8x384xf32> to vector<8x128xf32>
    %c0_12 = arith.constant 0 : index
    %c256 = arith.constant 256 : index
    %31 = vector.load %arg4[%c0_12, %c256] : memref<8x384xf32, #tpu.memory_space<vmem>>, vector<8x128xf32>
    tpu.vector_store %arg4[%c0_12, %c256], %30 {strides = array<i32>} : memref<8x384xf32, #tpu.memory_space<vmem>>, vector<8x128xf32>,
    return
  }
  func.func @transform_0(%arg0: i32) -> (i32, i32) {
    %c0_i32 = arith.constant 0 : i32
    %c0_i32_0 = arith.constant 0 : i32
    return %arg0, %c0_i32 : i32, i32
  }
  func.func @transform_1(%arg0: i32) -> (i32, i32) {
    %c0_i32 = arith.constant 0 : i32
    %c0_i32_0 = arith.constant 0 : i32
    %c0_i32_1 = arith.constant 0 : i32
    return %c0_i32, %c0_i32_0 : i32, i32
  }
  func.func @transform_2(%arg0: i32) -> (i32, i32) {
    %c0_i32 = arith.constant 0 : i32
    %c0_i32_0 = arith.constant 0 : i32
    %c0_i32_1 = arith.constant 0 : i32
    return %c0_i32, %c0_i32_0 : i32, i32
  }
  func.func @transform_3(%arg0: i32) -> (i32, i32) {
    %c0_i32 = arith.constant 0 : i32
    %c0_i32_0 = arith.constant 0 : i32
    return %arg0, %c0_i32 : i32, i32
  }
}

</mosaic_0001>

<llo_original>
// kernel: tpu_custom_call.1
$region0: #{tpu_custom_call.1}
  #allocation0 [shape = 'u32[]', space=smem, size = 0x4, offset = 0x4, fixed_abs, tag = 'smem constant byte address 0x4 - core index']
  #allocation1 [shape = 'u32[72,128]{1,0:T(1,128)}', space=vmem, size = 0x9000, scoped, tag = 'internal scratch']
  %s0 = inlined_call_operand.hbm [shape: f32[8,32], index: 0, kind: input, shape index: {}]
  %s1 = inlined_call_operand.hbm [shape: f32[32,384], index: 1, kind: input, shape index: {}]
  %s2 = inlined_call_operand.hbm [shape: f32[1,384], index: 2, kind: input, shape index: {}]
  %s3 = inlined_call_operand.hbm [shape: f32[8,384], index: 3, kind: output, shape index: {}]
  %s4 = sld [smem:[#allocation0]]
  $region34: #{tpu_custom_call.1} parent=0
    _
  %s6 = ssub.s32 1, %s4
  %s7 = scalar_select 0, %s6, %s4
  $region1: #{tpu_custom_call.1} parent=0
    #allocation2 [shape = 'u8[4096]{0}', space=vmem, size = 0x1000, scoped, tag = 'input window, operand 0, single buffered']
    #allocation3 [shape = 's32[1]{0}', space=sflag, size = 0x4, scoped, tag = 'scoped memory for tpu_custom_call.1']
    #allocation4 [shape = 's32[1]{0}', space=sflag, size = 0x4, scoped, tag = 'scoped memory for tpu_custom_call.1']
    #allocation5 [shape = 'u8[49152]{0}', space=vmem, size = 0xc000, scoped, tag = 'input window, operand 1, single buffered']
    #allocation6 [shape = 's32[1]{0}', space=sflag, size = 0x4, scoped, tag = 'scoped memory for tpu_custom_call.1']
    #allocation7 [shape = 'u8[1536]{0}', space=vmem, size = 0x800, scoped, tag = 'input window, operand 2, single buffered']
    #allocation8 [shape = 'u8[12288]{0}', space=vmem, size = 0x3000, scoped, tag = 'output window, operand 0, single buffered']
    %8 = vsyncpa [#allocation3], 0
    %9 = vsyncpa [#allocation6], 0
    %10 = vsyncpa [#allocation4], 0
    // Predicated region
    $region2: #{tpu_custom_call.1} parent=1 // pred_check
      _
    $region3: #{tpu_custom_call.1} parent=1 // pred_check_branch
      %12 = sbr.rel (0) target = $region5
    $region4: #{tpu_custom_call.1} parent=1 // pred_region
      %14 = vsyncadd [#allocation3], 0
      %s16 = sshll.u32 %s0, 4
      %s17 = int_to_ptr.hbm [resolvable:$true] %s16
      %s18 = sshll.u32 [#allocation2], 4
      %s19 = int_to_ptr.vmem [resolvable:$true] %s18
      %21 = dma.hbm_to_vmem [thread:$0]  %s17, 128, %s19, [#allocation3]
    $region5: #{tpu_custom_call.1} parent=1 // pred_fallthru
      _
    // Predicated region
    $region6: #{tpu_custom_call.1} parent=1 // pred_check
      _
    $region7: #{tpu_custom_call.1} parent=1 // pred_check_branch
      %23 = sbr.rel (0) target = $region9
    $region8: #{tpu_custom_call.1} parent=1 // pred_region
      %25 = vsyncadd [#allocation6], 0
      %s26 = sshll.u32 %s1, 4
      %s27 = int_to_ptr.hbm [resolvable:$true] %s26
      %s28 = sshll.u32 [#allocation5], 4
      %s29 = int_to_ptr.vmem [resolvable:$true] %s28
      %34 = dma.hbm_to_vmem [thread:$0]  %s27, 1536, %s29, [#allocation6], 384, 384, 24
    $region9: #{tpu_custom_call.1} parent=1 // pred_fallthru
      _
    // Predicated region
    $region10: #{tpu_custom_call.1} parent=1 // pred_check
      _
    $region11: #{tpu_custom_call.1} parent=1 // pred_check_branch
      %36 = sbr.rel (0) target = $region13
    $region12: #{tpu_custom_call.1} parent=1 // pred_region
      %38 = vsyncadd [#allocation6], 0
      %s40 = sshll.u32 %s2, 4
      %s41 = int_to_ptr.hbm [resolvable:$true] %s40
      %s42 = sshll.u32 [#allocation7], 4
      %s43 = int_to_ptr.vmem [resolvable:$true] %s42
      %45 = dma.hbm_to_vmem [thread:$0]  %s41, 48, %s43, [#allocation6]
    $region13: #{tpu_custom_call.1} parent=1 // pred_fallthru
      _
    // Predicated region
    $region14: #{tpu_custom_call.1} parent=1 // pred_check
      _
    $region15: #{tpu_custom_call.1} parent=1 // pred_check_branch
      %47 = sbr.rel (0) target = $region17
    $region16: #{tpu_custom_call.1} parent=1 // pred_region
      %49 = dma.done [#allocation3], 128
    $region17: #{tpu_custom_call.1} parent=1 // pred_fallthru
      _
    // Predicated region
    $region18: #{tpu_custom_call.1} parent=1 // pred_check
      _
    $region19: #{tpu_custom_call.1} parent=1 // pred_check_branch
      %51 = sbr.rel (0) target = $region21
    $region20: #{tpu_custom_call.1} parent=1 // pred_region
      %53 = dma.done [#allocation6], 1536
    $region21: #{tpu_custom_call.1} parent=1 // pred_fallthru
      _
    // Predicated region
    $region22: #{tpu_custom_call.1} parent=1 // pred_check
      _
    $region23: #{tpu_custom_call.1} parent=1 // pred_check_branch
      %55 = sbr.rel (0) target = $region25
    $region24: #{tpu_custom_call.1} parent=1 // pred_region
      %57 = dma.done [#allocation6], 48
    $region25: #{tpu_custom_call.1} parent=1 // pred_fallthru
      _
    %v58 = vld [vmem:[#allocation2] sm:$0xff]
    %v59 = vld [vmem:[#allocation5] sm:$0xff]
    %v60 = vld [vmem:[#allocation5 + $0x8] sm:$0xff]
    %v61 = vld [vmem:[#allocation5 + $0x10] sm:$0xff]
    %v62 = vld [vmem:[#allocation5 + $0x18] sm:$0xff]
    %v63 = vld [vmem:[#allocation5 + $0x20] sm:$0xff]
    %v64 = vld [vmem:[#allocation5 + $0x28] sm:$0xff]
    %v65 = vld [vmem:[#allocation5 + $0x30] sm:$0xff]
    %v66 = vld [vmem:[#allocation5 + $0x38] sm:$0xff]
    %v67 = vld [vmem:[#allocation5 + $0x40] sm:$0xff]
    %v68 = vld [vmem:[#allocation5 + $0x48] sm:$0xff]
    %v69 = vld [vmem:[#allocation5 + $0x50] sm:$0xff]
    %v70 = vld [vmem:[#allocation5 + $0x58] sm:$0xff]
    %v71 = vld [vmem:[#allocation7] sm:$0x7]
    %v73 = vperm.slane %v71, 0
    %v74 = vperm.slane %v71, 1
    %v75 = vperm.slane %v71, 2
    %vm79 = vcmask 261120
    %v81 = vsel %vm79, %v58, 0
    %83 = vmatpush.msra.mxu0 0.0
    %84 = vmatpush.msra.mxu0 0.0
    %85 = vmatpush.msra.mxu0 0.0
    %86 = vmatpush.msra.mxu0 0.0
    %87 = vmatpush.msra.mxu0 0.0
    %88 = vmatpush.msra.mxu0 0.0
    %89 = vmatpush.msra.mxu0 0.0
    %90 = vmatpush.msra.mxu0 0.0
    %91 = vmatpush.msra.mxu0 0.0
    %92 = vmatpush.msra.mxu0 0.0
    %93 = vmatpush.msra.mxu0 0.0
    %94 = vmatpush.msra.mxu0 0.0
    %95 = vmatpush.msra.mxu0 %v68
    %96 = vmatpush.msra.mxu0 %v65
    %97 = vmatpush.msra.mxu0 %v62
    %98 = vmatpush.msra.mxu0 %v59
    %99 = vmatmul.f32.gmra.mxu0 %v81
    %v100 = vpop.f32.mrf.mxu0
    %v101 = vadd.f32 %v73, %v100
    %102 = vdwg.mxu0
    %103 = vmatpush.msra.mxu0 0.0
    %104 = vmatpush.msra.mxu0 0.0
    %105 = vmatpush.msra.mxu0 0.0
    %106 = vmatpush.msra.mxu0 0.0
    %107 = vmatpush.msra.mxu0 0.0
    %108 = vmatpush.msra.mxu0 0.0
    %109 = vmatpush.msra.mxu0 0.0
    %110 = vmatpush.msra.mxu0 0.0
    %111 = vmatpush.msra.mxu0 0.0
    %112 = vmatpush.msra.mxu0 0.0
    %113 = vmatpush.msra.mxu0 0.0
    %114 = vmatpush.msra.mxu0 0.0
    %115 = vmatpush.msra.mxu0 %v69
    %116 = vmatpush.msra.mxu0 %v66
    %117 = vmatpush.msra.mxu0 %v63
    %118 = vmatpush.msra.mxu0 %v60
    %119 = vmatmul.f32.gmra.mxu0 %v81
    %v120 = vpop.f32.mrf.mxu0
    %v121 = vadd.f32 %v74, %v120
    %122 = vdwg.mxu0
    %123 = vmatpush.msra.mxu0 0.0
    %124 = vmatpush.msra.mxu0 0.0
    %125 = vmatpush.msra.mxu0 0.0
    %126 = vmatpush.msra.mxu0 0.0
    %127 = vmatpush.msra.mxu0 0.0
    %128 = vmatpush.msra.mxu0 0.0
    %129 = vmatpush.msra.mxu0 0.0
    %130 = vmatpush.msra.mxu0 0.0
    %131 = vmatpush.msra.mxu0 0.0
    %132 = vmatpush.msra.mxu0 0.0
    %133 = vmatpush.msra.mxu0 0.0
    %134 = vmatpush.msra.mxu0 0.0
    %135 = vmatpush.msra.mxu0 %v70
    %136 = vmatpush.msra.mxu0 %v67
    %137 = vmatpush.msra.mxu0 %v64
    %138 = vmatpush.msra.mxu0 %v61
    %139 = vmatmul.f32.gmra.mxu0 %v81
    %v140 = vpop.f32.mrf.mxu0
    %v141 = vadd.f32 %v75, %v140
    %142 = vdwg.mxu0
    %v143 = vlaneseq
    %v144 = vand.u32 %v143, 127
    %vm145 = vcmp.lt.s32.totalorder %v144, 20
    %v146 = vsel %vm145, %v101, -1e+30
    %147 = vmax.xlane.f32.xlu0 %v146
    %v148 = vpop.xlane.xlu0 %147
    %v149 = vsub.f32 %v146, %v148
    %v150 = vmul.f32 %v149, 1.442695
    %v151 = vpow.pop %v150
    %152 = vadd.xlane.f32.xlu0 %v151
    %v153 = vpop.xlane.xlu0 %152
    %v154 = vrcp.pop %v153
    %v155 = vmul.f32 %v153, %v154
    %v156 = vsub.f32 2.0, %v155
    %v157 = vmul.f32 %v154, %v156
    %v158 = vmul.f32 %v151, %v157
    %159 = vst [vmem:[#allocation8] sm:$0xff] %v158
    %v160 = vmul.f32 %v121, 1.442695
    %v161 = vpow.pop %v160
    %162 = vst [vmem:[#allocation8 + $0x8] sm:$0xff] %v161
    %163 = vst [vmem:[#allocation8 + $0x10] sm:$0xff] %v141
    // Predicated region
    $region26: #{tpu_custom_call.1} parent=1 // pred_check
      _
    $region27: #{tpu_custom_call.1} parent=1 // pred_check_branch
      %165 = sbr.rel (0) target = $region29
    $region28: #{tpu_custom_call.1} parent=1 // pred_region
      %167 = vsyncadd [#allocation4], 0
      %s169 = sshll.u32 [#allocation8], 4
      %s170 = int_to_ptr.vmem [resolvable:$true] %s169
      %s171 = sshll.u32 %s3, 4
      %s172 = int_to_ptr.hbm [resolvable:$true] %s171
      %174 = dma.vmem_to_hbm [thread:$0]  %s170, 384, %s172, [#allocation4]
    $region29: #{tpu_custom_call.1} parent=1 // pred_fallthru
      _
    // Predicated region
    $region30: #{tpu_custom_call.1} parent=1 // pred_check
      _
    $region31: #{tpu_custom_call.1} parent=1 // pred_check_branch
      %176 = sbr.rel (0) target = $region33
    $region32: #{tpu_custom_call.1} parent=1 // pred_region
      %178 = dma.done [#allocation4], 384
    $region33: #{tpu_custom_call.1} parent=1 // pred_fallthru
      _
    %179 = vsyncpa [#allocation3], 1
    %180 = vsyncpa [#allocation6], 1
    %181 = vsyncpa [#allocation4], 1

</llo_original>
